<compile_context>
chip_gen: v7x
topology: tpu7x:2x2x1
jax: 0.10.0
libtpu: 0.0.40
codegen_flags: <defaults>
</compile_context>

<pallas_src>
import math
import functools

import jax
import jax.numpy as jnp
from jax.experimental import pallas as pl
from jax.experimental.pallas import tpu as pltpu


def _make_pe(max_len: int, d_model: int) -> jnp.ndarray:
    """Deterministic sinusoidal positional-encoding buffer (same math as __init__)."""
    position = jnp.arange(max_len, dtype=jnp.float32)[:, None]            # [max_len, 1]
    div_term = jnp.exp(
        jnp.arange(0, d_model, 2, dtype=jnp.float32) * (-math.log(10000.0) / d_model)
    )                                                                      # [d_model/2]
    pe = jnp.zeros((max_len, d_model), dtype=jnp.float32)
    pe = pe.at[:, 0::2].set(jnp.sin(position * div_term))
    pe = pe.at[:, 1::2].set(jnp.cos(position * div_term))
    return pe


def _pick_row_tile(n_rows: int) -> int:
    """Multiple-of-8 divisor of the batch dim (or the full batch)."""
    for t in (64, 32, 16, 8):
        if n_rows % t == 0:
            return t
    return n_rows  # full dim is always legal


def _pick_col_tile(n_cols: int, row_tile: int, target_bytes: int = 2 << 20) -> int:
    """Largest multiple-of-128 divisor of n_cols keeping an f32 block <= target_bytes."""
    max_cols = max(128, (target_bytes // 4) // max(row_tile, 1))
    if n_cols <= max_cols or n_cols % 128 != 0:
        return n_cols  # full width is always legal
    t = (min(max_cols, n_cols) // 128) * 128
    while t >= 128:
        if n_cols % t == 0:
            return t
        t -= 128
    return n_cols


def _pe_kernel(*refs, p: float, use_dropout: bool):
    if use_dropout:
        x_ref, pe_ref, u_ref, o_ref = refs
    else:
        x_ref, pe_ref, o_ref = refs
    # pe block is (1, tc): broadcasts over the batch-row sublanes.
    val = x_ref[...].astype(jnp.float32) + pe_ref[...]
    if use_dropout:
        keep = u_ref[...] >= jnp.float32(p)                 # P(keep) = 1 - p
        val = jnp.where(keep, val * jnp.float32(1.0 / (1.0 - p)), jnp.float32(0.0))
    o_ref[...] = val.astype(o_ref.dtype)


def _dropout_uniform(seed: int, shape):
    return jax.random.uniform(jax.random.PRNGKey(seed), shape, dtype=jnp.float32)


def positional_encoding(x, pe, seed: int = 0, *, p: float = 0.1, training: bool = False):
    """x: [B, S, D]. pe: [max_len, D]. Returns dropout(x + pe[:S])."""
    B, S, D = x.shape
    n_cols = S * D

    # Lane-dense 2-D views; the batch-broadcast add is preserved exactly.
    x2 = x.reshape(B, n_cols)
    pe2 = pe[:S].reshape(1, n_cols).astype(jnp.float32)

    use_dropout = bool(training) and p > 0.0

    tr = _pick_row_tile(B)
    tc = _pick_col_tile(n_cols, tr)
    grid = (B // tr, n_cols // tc)

    x_spec = pl.BlockSpec((tr, tc), lambda r, c: (r, c))
    pe_spec = pl.BlockSpec((1, tc), lambda r, c: (0, c))   # ignores batch-tile axis

    in_specs = [x_spec, pe_spec]
    inputs = [x2, pe2]
    if use_dropout:
        in_specs.append(x_spec)
        inputs.append(_dropout_uniform(seed, (B, n_cols)))

    itemsize = 4  # f32
    n_elem = B * n_cols
    bytes_accessed = (2 * n_elem + n_cols) * itemsize
    if use_dropout:
        bytes_accessed += n_elem * itemsize
    cost = pl.CostEstimate(
        flops=n_elem * (3 if use_dropout else 1),
        transcendentals=0,
        bytes_accessed=bytes_accessed,
    )

    kernel = functools.partial(_pe_kernel, p=float(p), use_dropout=use_dropout)

    out2 = pl.pallas_call(
        kernel,
        out_shape=jax.ShapeDtypeStruct((B, n_cols), x.dtype),
        grid_spec=pltpu.PrefetchScalarGridSpec(
            num_scalar_prefetch=0,
            grid=grid,
            in_specs=in_specs,
            out_specs=x_spec,
        ),
        compiler_params=pltpu.CompilerParams(
            dimension_semantics=("parallel", "parallel"),
        ),
        cost_estimate=cost,
    )(*inputs)
    return out2.reshape(B, S, D)


if __name__ == "__main__":
    # Small shapes consistent with the module's forward: [batch, seq, d_model]
    B, S, D = 2, 8, 32
    MAX_LEN = 2048
    DROPOUT_P = 0.1

    key = jax.random.PRNGKey(0)
    x = jax.random.normal(key, (B, S, D), dtype=jnp.float32)
    pe = _make_pe(MAX_LEN, D)

    ref = x + pe[:S][None, :, :]

    # Eval mode (dropout = identity): must match x + pe[:S].
    out_eval = jax.block_until_ready(
        positional_encoding(x, pe, seed=0, p=DROPOUT_P, training=False))
    assert out_eval.shape == (B, S, D)
    assert jnp.allclose(out_eval, ref, atol=1e-6), "eval-mode mismatch"

    # Training mode: deterministic given the seed (mask generated in wrapper,
    # applied + scaled in-kernel).
    out_train = jax.block_until_ready(
        positional_encoding(x, pe, seed=1234, p=DROPOUT_P, training=True))
    assert out_train.shape == (B, S, D)
    u = _dropout_uniform(1234, (B, S * D)).reshape(B, S, D)
    expected_train = jnp.where(
        u >= DROPOUT_P, ref * jnp.float32(1.0 / (1.0 - DROPOUT_P)), jnp.float32(0.0))
    assert jnp.allclose(out_train, expected_train, atol=1e-5), "training-mode mismatch"

    print("KERNEL_OK")
</pallas_src>

<mosaic_0001>
module attributes {stable_mosaic.version = 11 : i64} {
  func.func @_pe_kernel(%arg0: i32, %arg1: i32, %arg2: memref<2x256xf32, #tpu.memory_space<vmem>>, %arg3: memref<1x256xf32, #tpu.memory_space<vmem>>, %arg4: memref<2x256xf32, #tpu.memory_space<vmem>>) attributes {dimension_semantics = [#tpu.dimension_semantics<parallel>, #tpu.dimension_semantics<parallel>], iteration_bounds = array<i64: 1, 1>, scalar_prefetch = 0 : i64, scratch_operands = 0 : i64, tpu.core_type = #tpu.core_type<tc>, window_params = [{transform_indices = @transform_0, window_bounds = array<i64: 2, 256>}, {transform_indices = @transform_1, window_bounds = array<i64: 1, 256>}, {transform_indices = @transform_2, window_bounds = array<i64: 2, 256>}]} {
    %c0 = arith.constant 0 : index
    %c0_0 = arith.constant 0 : index
    %0 = vector.load %arg2[%c0, %c0_0] : memref<2x256xf32, #tpu.memory_space<vmem>>, vector<2x256xf32>
    %c0_1 = arith.constant 0 : index
    %c0_2 = arith.constant 0 : index
    %1 = vector.load %arg3[%c0_1, %c0_2] : memref<1x256xf32, #tpu.memory_space<vmem>>, vector<1x256xf32>
    %2 = vector.broadcast %1 : vector<1x256xf32> to vector<2x256xf32>
    %3 = arith.addf %0, %2 : vector<2x256xf32>
    %c0_3 = arith.constant 0 : index
    %c0_4 = arith.constant 0 : index
    %4 = vector.load %arg4[%c0_3, %c0_4] : memref<2x256xf32, #tpu.memory_space<vmem>>, vector<2x256xf32>
    tpu.vector_store %arg4[%c0_3, %c0_4], %3 {strides = array<i32>} : memref<2x256xf32, #tpu.memory_space<vmem>>, vector<2x256xf32>,
    return
  }
  func.func @transform_0(%arg0: i32, %arg1: i32) -> (i32, i32) {
    %c0_i32 = arith.constant 0 : i32
    return %arg0, %arg1 : i32, i32
  }
  func.func @transform_1(%arg0: i32, %arg1: i32) -> (i32, i32) {
    %c0_i32 = arith.constant 0 : i32
    %c0_i32_0 = arith.constant 0 : i32
    return %c0_i32, %arg1 : i32, i32
  }
  func.func @transform_2(%arg0: i32, %arg1: i32) -> (i32, i32) {
    %c0_i32 = arith.constant 0 : i32
    return %arg0, %arg1 : i32, i32
  }
}

</mosaic_0001>

<llo_original>
// kernel: tpu_custom_call.1
$region0: #{tpu_custom_call.1}
  #allocation0 [shape = 'u32[]', space=smem, size = 0x4, offset = 0x4, fixed_abs, tag = 'smem constant byte address 0x4 - core index']
  #allocation1 [shape = 'u32[144,128]{1,0:T(1,128)}', space=vmem, size = 0x12000, scoped, tag = 'internal scratch']
  %s0 = inlined_call_operand.hbm [shape: f32[2,256], index: 0, kind: input, shape index: {}]
  %s1 = inlined_call_operand.vmem [shape: f32[1,256], index: 1, kind: input, shape index: {}]
  %s2 = inlined_call_operand.hbm [shape: f32[2,256], index: 2, kind: output, shape index: {}]
  %s3 = sld [smem:[#allocation0]]
  $region22: #{tpu_custom_call.1} parent=0
    _
  %s5 = ssub.s32 1, %s3
  %s6 = scalar_select 0, %s5, %s3
  $region1: #{tpu_custom_call.1} parent=0
    #allocation2 [shape = 'u8[2048]{0}', space=vmem, size = 0x800, scoped, tag = 'input window, operand 0, single buffered']
    #allocation3 [shape = 's32[1]{0}', space=sflag, size = 0x4, scoped, tag = 'scoped memory for tpu_custom_call.1']
    #allocation4 [shape = 's32[1]{0}', space=sflag, size = 0x4, scoped, tag = 'scoped memory for tpu_custom_call.1']
    #allocation5 [shape = 'u8[2048]{0}', space=vmem, size = 0x800, scoped, tag = 'output window, operand 0, single buffered']
    %7 = vsyncpa [#allocation3], 0
    %8 = vsyncpa [#allocation4], 0
    // Predicated region
    $region2: #{tpu_custom_call.1} parent=1 // pred_check
      _
    $region3: #{tpu_custom_call.1} parent=1 // pred_check_branch
      %10 = sbr.rel (0) target = $region5
    $region4: #{tpu_custom_call.1} parent=1 // pred_region
      %s12 = ssub.s32 64, 64
      %13 = vsyncadd [#allocation3], %s12
      %s15 = sshll.u32 [#allocation2], 4
      %s16 = int_to_ptr.vmem [resolvable:$true] %s15
      %18 = dma.hbm_to_vmem [thread:$0]  %s0, 64, %s16, [#allocation3]
    $region5: #{tpu_custom_call.1} parent=1 // pred_fallthru
      _
    // Predicated region
    $region6: #{tpu_custom_call.1} parent=1 // pred_check
      _
    $region7: #{tpu_custom_call.1} parent=1 // pred_check_branch
      %20 = sbr.rel (0) target = $region9
    $region8: #{tpu_custom_call.1} parent=1 // pred_region
      _
    $region9: #{tpu_custom_call.1} parent=1 // pred_fallthru
      _
    // Predicated region
    $region10: #{tpu_custom_call.1} parent=1 // pred_check
      _
    $region11: #{tpu_custom_call.1} parent=1 // pred_check_branch
      %22 = sbr.rel (0) target = $region13
    $region12: #{tpu_custom_call.1} parent=1 // pred_region
      %23 = dma.done [#allocation3], 64
    $region13: #{tpu_custom_call.1} parent=1 // pred_fallthru
      _
    %v24 = vld [vmem:[#allocation2] sm:$0xf]
    %v25 = vld [vmem:[%s1] sm:$0x3]
    %v27 = vlaneseq
    %v28 = vshrl.u32 %v27, 7
    %v29 = vsub.s32 0, %v28
    %v30 = vrot.slane %v25, %v29
    %v31 = vlaneseq
    %v32 = vshrl.u32 %v31, 7
    %v33 = vsub.s32 1, %v32
    %v34 = vrot.slane %v25, %v33
    %v35 = vcombine.low %v30, %v34
    %v37 = vunpack.c.l.s4 1983009808
    %v38 = vunpack.c.0.s8 %v37
    %v39 = vlaneseq
    %v40 = vshrl.u32 %v39, 7
    %v41 = vsub.s32 %v38, %v40
    %v42 = vrot.slane %v35, %v41
    %v44 = vadd.f32 %v24, %v42
    %45 = vst [vmem:[#allocation5] sm:$0xf] %v44
    // Predicated region
    $region14: #{tpu_custom_call.1} parent=1 // pred_check
      _
    $region15: #{tpu_custom_call.1} parent=1 // pred_check_branch
      %47 = sbr.rel (0) target = $region17
    $region16: #{tpu_custom_call.1} parent=1 // pred_region
      %s49 = ssub.s32 64, 64
      %50 = vsyncadd [#allocation4], %s49
      %s52 = sshll.u32 [#allocation5], 4
      %s53 = int_to_ptr.vmem [resolvable:$true] %s52
      %55 = dma.vmem_to_hbm [thread:$0]  %s53, 64, %s2, [#allocation4]
    $region17: #{tpu_custom_call.1} parent=1 // pred_fallthru
      _
    // Predicated region
    $region18: #{tpu_custom_call.1} parent=1 // pred_check
      _
    $region19: #{tpu_custom_call.1} parent=1 // pred_check_branch
      %57 = sbr.rel (0) target = $region21
    $region20: #{tpu_custom_call.1} parent=1 // pred_region
      %58 = dma.done [#allocation4], 64
    $region21: #{tpu_custom_call.1} parent=1 // pred_fallthru
      _
    %59 = vsyncpa [#allocation3], 1
    %60 = vsyncpa [#allocation4], 1

</llo_original>
